<compile_context>
chip_gen: v7x
topology: tpu7x:2x2x1
jax: 0.10.0
libtpu: 0.0.40
codegen_flags: <defaults>
</compile_context>

<pallas_src>
import functools

import jax
import jax.numpy as jnp
from jax.experimental import pallas as pl
from jax.experimental.pallas import tpu as pltpu


def _round_up(v, m):
    return ((v + m - 1) // m) * m


# ----------------------------------------------------------------------------
# Pallas kernel: one (tm, tn) output tile, reduced over the K grid axis.
# ----------------------------------------------------------------------------
def _fc_kernel(x_ref, w_ref, b_ref, o_ref, acc_ref, *, slope):
    k = pl.program_id(2)

    @pl.when(k == 0)
    def _():
        acc_ref[...] = jnp.zeros_like(acc_ref)

    # x tile [tm, tk] (bf16) . w tile [tn, tk] (bf16, PyTorch [out, in] layout)
    # Contract both last dims -> no weight transpose materialized in HBM.
    acc_ref[...] += jax.lax.dot_general(
        x_ref[...], w_ref[...],
        dimension_numbers=(((1,), (1,)), ((), ())),
        preferred_element_type=jnp.float32)

    @pl.when(k == pl.num_programs(2) - 1)
    def _():
        out = acc_ref[...] + b_ref[...]
        out = jnp.where(out >= 0, out, out * slope)   # fused leaky_relu(0.2)
        o_ref[...] = out.astype(o_ref.dtype)


def _pick_tiles(M, N, K):
    """Tile sizes sized for the MXU and for v7x's 64 MiB VMEM."""
    tm = min(256, _round_up(M, 8))
    if N >= 256:
        tn = 256
    elif N >= 128:
        tn = 128
    else:
        tn = N                      # full-dim block (exempt from 128 rule)
    if K <= 512:
        tk, Kp = K, K               # single full-K block, no padding needed
    else:
        Kp = _round_up(K, 128)      # lane-align K (zero pad is exact)
        tk = 128
        for cand in (512, 384, 256):
            if Kp % cand == 0:
                tk = cand
                break
    return tm, tn, tk, Kp


def fc_linear_leaky(x, weight, bias, *, w_lrmul=1.0, b_lrmul=1.0, slope=0.2):
    """leaky_relu(x @ (weight * w_lrmul).T + bias * b_lrmul, slope).

    x: [..., K] float, weight: [N, K] (PyTorch layout), bias: [N] or None.
    """
    orig_shape = x.shape
    K = orig_shape[-1]
    x2 = x.reshape(-1, K)
    M = x2.shape[0]
    N = weight.shape[0]

    tm, tn, tk, Kp = _pick_tiles(M, N, K)

    # bf16 operands for the MXU; scales folded in f32 first.
    a = x2.astype(jnp.bfloat16)
    w = (weight.astype(jnp.float32) * w_lrmul).astype(jnp.bfloat16)
    if bias is not None:
        b = (bias.astype(jnp.float32) * b_lrmul).reshape(1, N)
    else:
        b = jnp.zeros((1, N), jnp.float32)

    # K reduction must never see undefined block padding -> zero-pad if ragged.
    if Kp != K:
        a = jnp.pad(a, ((0, 0), (0, Kp - K)))
        w = jnp.pad(w, ((0, 0), (0, Kp - K)))

    # Sublane-align M only when needed (tiny, usually a no-op).
    Mp = _round_up(M, 8)
    if Mp != M:
        a = jnp.pad(a, ((0, Mp - M), (0, 0)))

    grid = (pl.cdiv(Mp, tm), pl.cdiv(N, tn), Kp // tk)

    out = pl.pallas_call(
        functools.partial(_fc_kernel, slope=slope),
        out_shape=jax.ShapeDtypeStruct((Mp, N), jnp.float32),
        grid=grid,
        in_specs=[
            pl.BlockSpec((tm, tk), lambda i, j, k: (i, k)),   # activations
            pl.BlockSpec((tn, tk), lambda i, j, k: (j, k)),   # weight [out, in]
            pl.BlockSpec((1, tn), lambda i, j, k: (0, j)),    # bias
        ],
        out_specs=pl.BlockSpec((tm, tn), lambda i, j, k: (i, j)),
        scratch_shapes=[pltpu.VMEM((tm, tn), jnp.float32)],
        compiler_params=pltpu.CompilerParams(
            dimension_semantics=("parallel", "parallel", "arbitrary")),
    )(a, w, b)

    if Mp != M:
        out = out[:M]
    return out.reshape(orig_shape[:-1] + (N,))


# ----------------------------------------------------------------------------
# FC module wrapper (mirrors the PyTorch parameterization).
# ----------------------------------------------------------------------------
class FC:
    def __init__(self, key, in_channels, out_channels, gain=2 ** 0.5,
                 use_wscale=False, lrmul=1.0, bias=True):
        he_std = gain * in_channels ** (-0.5)
        if use_wscale:
            init_std = 1.0 / lrmul
            self.w_lrmul = he_std * lrmul
        else:
            init_std = he_std / lrmul
            self.w_lrmul = lrmul
        # TODO(synk): torch.cuda.manual_seed(1)+torch.randn is not reproducible in
        # JAX; deterministic jax.random normal init with the same std is used.
        self.weight = jax.random.normal(
            key, (out_channels, in_channels), jnp.float32) * init_std
        if bias:
            self.bias = jnp.zeros((out_channels,), jnp.float32)
            self.b_lrmul = lrmul
        else:
            self.bias = None
            self.b_lrmul = 1.0

    def __call__(self, x):
        return fc_linear_leaky(x, self.weight, self.bias,
                               w_lrmul=self.w_lrmul, b_lrmul=self.b_lrmul,
                               slope=0.2)


# ----------------------------------------------------------------------------
if __name__ == "__main__":
    key = jax.random.PRNGKey(0)
    k_w, k_x = jax.random.split(key)

    in_channels, out_channels, batch = 512, 512, 8   # FC(512, 512) as in SRFMD
    fc = FC(k_w, in_channels, out_channels)
    x = jax.random.normal(k_x, (batch, in_channels), jnp.float32)

    fwd = jax.jit(functools.partial(
        fc_linear_leaky, w_lrmul=fc.w_lrmul, b_lrmul=fc.b_lrmul, slope=0.2))
    out = fwd(x, fc.weight, fc.bias)
    out = jax.block_until_ready(out)
    assert out.shape == (batch, out_channels), out.shape
    assert bool(jnp.all(jnp.isfinite(out)))

    # pure-JAX f32 reference; bf16-operand tolerance on the MXU path
    ref = x @ (fc.weight * fc.w_lrmul).T + fc.bias * fc.b_lrmul
    ref = jnp.where(ref >= 0, ref, ref * 0.2)
    max_err = float(jnp.max(jnp.abs(out - ref)))
    assert max_err < 1e-1, max_err

    print("KERNEL_OK")
</pallas_src>

<mosaic_0001>
module attributes {stable_mosaic.version = 11 : i64} {
  func.func @_fc_kernel(%arg0: i32, %arg1: i32, %arg2: i32, %arg3: memref<8x512xbf16, #tpu.memory_space<vmem>>, %arg4: memref<256x512xbf16, #tpu.memory_space<vmem>>, %arg5: memref<1x256xf32, #tpu.memory_space<vmem>>, %arg6: memref<8x256xf32, #tpu.memory_space<vmem>>, %arg7: memref<8x256xf32, #tpu.memory_space<vmem>>) attributes {dimension_semantics = [#tpu.dimension_semantics<parallel>, #tpu.dimension_semantics<parallel>, #tpu.dimension_semantics<arbitrary>], iteration_bounds = array<i64: 1, 2, 1>, scalar_prefetch = 0 : i64, scratch_operands = 1 : i64, tpu.core_type = #tpu.core_type<tc>, window_params = [{transform_indices = @transform_0, window_bounds = array<i64: 8, 512>}, {transform_indices = @transform_1, window_bounds = array<i64: 256, 512>}, {transform_indices = @transform_2, window_bounds = array<i64: 1, 256>}, {transform_indices = @transform_3, window_bounds = array<i64: 8, 256>}]} {
    %c0_i32 = arith.constant 0 : i32
    %0 = arith.cmpi eq, %arg2, %c0_i32 : i32
    %1 = arith.extui %0 : i1 to i32
    %c0_i32_0 = arith.constant 0 : i32
    %2 = arith.cmpi ne, %1, %c0_i32_0 : i32
    scf.if %2 {
      %cst_10 = arith.constant 0.000000e+00 : f32
      %12 = vector.broadcast %cst_10 : f32 to vector<8x256xf32>
      %c0_11 = arith.constant 0 : index
      %c0_12 = arith.constant 0 : index
      %13 = vector.load %arg7[%c0_11, %c0_12] : memref<8x256xf32, #tpu.memory_space<vmem>>, vector<8x256xf32>
      tpu.vector_store %arg7[%c0_11, %c0_12], %12 {strides = array<i32>} : memref<8x256xf32, #tpu.memory_space<vmem>>, vector<8x256xf32>,
    } else {
    }
    %c0 = arith.constant 0 : index
    %c0_1 = arith.constant 0 : index
    %3 = vector.load %arg7[%c0, %c0_1] : memref<8x256xf32, #tpu.memory_space<vmem>>, vector<8x256xf32>
    %c0_2 = arith.constant 0 : index
    %c0_3 = arith.constant 0 : index
    %4 = vector.load %arg3[%c0_2, %c0_3] : memref<8x512xbf16, #tpu.memory_space<vmem>>, vector<8x512xbf16>
    %c0_4 = arith.constant 0 : index
    %c0_5 = arith.constant 0 : index
    %5 = vector.load %arg4[%c0_4, %c0_5] : memref<256x512xbf16, #tpu.memory_space<vmem>>, vector<256x512xbf16>
    %cst = arith.constant dense<0.000000e+00> : vector<8x256xf32>
    %6 = tpu.matmul %4, %5, %cst {dimension_numbers = #tpu.dot_dimension_numbers<[1], [1], [0], [0], [0, 0, 1, 0], [], []>} : vector<8x512xbf16>, vector<256x512xbf16>, vector<8x256xf32> -> vector<8x256xf32>
    %7 = arith.addf %3, %6 : vector<8x256xf32>
    %c0_6 = arith.constant 0 : index
    %c0_7 = arith.constant 0 : index
    %8 = vector.load %arg7[%c0_6, %c0_7] : memref<8x256xf32, #tpu.memory_space<vmem>>, vector<8x256xf32>
    tpu.vector_store %arg7[%c0_6, %c0_7], %7 {strides = array<i32>} : memref<8x256xf32, #tpu.memory_space<vmem>>, vector<8x256xf32>,
    %c0_i32_8 = arith.constant 0 : i32
    %9 = arith.cmpi eq, %arg2, %c0_i32_8 : i32
    %10 = arith.extui %9 : i1 to i32
    %c0_i32_9 = arith.constant 0 : i32
    %11 = arith.cmpi ne, %10, %c0_i32_9 : i32
    scf.if %11 {
      %c0_10 = arith.constant 0 : index
      %c0_11 = arith.constant 0 : index
      %12 = vector.load %arg7[%c0_10, %c0_11] : memref<8x256xf32, #tpu.memory_space<vmem>>, vector<8x256xf32>
      %c0_12 = arith.constant 0 : index
      %c0_13 = arith.constant 0 : index
      %13 = vector.load %arg5[%c0_12, %c0_13] : memref<1x256xf32, #tpu.memory_space<vmem>>, vector<1x256xf32>
      %14 = vector.broadcast %13 : vector<1x256xf32> to vector<8x256xf32>
      %15 = arith.addf %12, %14 : vector<8x256xf32>
      %cst_14 = arith.constant 0.000000e+00 : f32
      %16 = vector.broadcast %cst_14 : f32 to vector<8x256xf32>
      %17 = arith.cmpf oge, %15, %16 : vector<8x256xf32>
      %cst_15 = arith.constant 2.000000e-01 : f32
      %18 = vector.broadcast %cst_15 : f32 to vector<8x256xf32>
      %19 = arith.mulf %15, %18 : vector<8x256xf32>
      %20 = arith.select %17, %15, %19 : vector<8x256xi1>, vector<8x256xf32>
      %c0_16 = arith.constant 0 : index
      %c0_17 = arith.constant 0 : index
      %21 = vector.load %arg6[%c0_16, %c0_17] : memref<8x256xf32, #tpu.memory_space<vmem>>, vector<8x256xf32>
      tpu.vector_store %arg6[%c0_16, %c0_17], %20 {strides = array<i32>} : memref<8x256xf32, #tpu.memory_space<vmem>>, vector<8x256xf32>,
    } else {
    }
    return
  }
  func.func @transform_0(%arg0: i32, %arg1: i32, %arg2: i32) -> (i32, i32) {
    %c0_i32 = arith.constant 0 : i32
    return %arg0, %arg2 : i32, i32
  }
  func.func @transform_1(%arg0: i32, %arg1: i32, %arg2: i32) -> (i32, i32) {
    %c0_i32 = arith.constant 0 : i32
    return %arg1, %arg2 : i32, i32
  }
  func.func @transform_2(%arg0: i32, %arg1: i32, %arg2: i32) -> (i32, i32) {
    %c0_i32 = arith.constant 0 : i32
    %c0_i32_0 = arith.constant 0 : i32
    return %c0_i32, %arg1 : i32, i32
  }
  func.func @transform_3(%arg0: i32, %arg1: i32, %arg2: i32) -> (i32, i32) {
    %c0_i32 = arith.constant 0 : i32
    return %arg0, %arg1 : i32, i32
  }
}

</mosaic_0001>

<llo_original>
// kernel: fc_linear_leaky.1
$region0: #{fc_linear_leaky.1}
  #allocation0 [shape = 'u32[]', space=smem, size = 0x4, offset = 0x4, fixed_abs, tag = 'smem constant byte address 0x4 - core index']
  #allocation1 [shape = 'u32[144,128]{1,0:T(1,128)}', space=vmem, size = 0x12000, scoped, tag = 'internal scratch']
  #allocation2 [shape = 'f32[8,256]{1,0:T(8,128)}', space=vmem, size = 0x2000, scoped, tag = 'scratch operand']
  %s0 = inlined_call_operand.vmem [shape: bf16[8,512], index: 0, kind: input, shape index: {}]
  %s1 = inlined_call_operand.vmem [shape: bf16[512,512], index: 1, kind: input, shape index: {}]
  %s2 = inlined_call_operand.vmem [shape: f32[1,512], index: 2, kind: input, shape index: {}]
  %s3 = inlined_call_operand.hbm [shape: f32[8,512], index: 3, kind: output, shape index: {}]
  %s4 = sld [smem:[#allocation0]]
  $region53: #{fc_linear_leaky.1} parent=0
    _
  %s6 = ssub.s32 1, %s4
  %s7 = scalar_select 0, %s6, %s4
  $region1: #{fc_linear_leaky.1} parent=0
    #allocation3 [shape = 'u8[16384]{0}', space=vmem, size = 0x4000, scoped, tag = 'output window, operand 0']
    #allocation4 [shape = 's32[2]{0}', space=sflag, size = 0x8, scoped, tag = 'scoped memory for fc_linear_leaky.1']
    %8 = vsyncpa [#allocation4], 0
    %s9 = scalar_lea.sflag [#allocation4], 1
    %10 = vsyncpa %s9, 0
    loop: start=0, step=1, limit=4
    $region2: #{fc_linear_leaky.1} parent=1 // loop_pre_header
      _
    $region3: #{fc_linear_leaky.1} parent=1 // loop_header
      %s12 = sphi 0, %s16
      %p13 = scmp.ge.s32.totalorder %s12, 4
      %s19 = sphi 0, %s38
      %s20 = sphi 0, %s34
      %s21 = sphi 0, %s30
      %s22 = sphi 0, %s19
      %s23 = sphi 0, %s20
      %s24 = sphi 0, %s21
      %s25 = sphi 0, %s22
      %s26 = sphi 0, %s23
      %s27 = sphi 0, %s24
      %s43 = sphi 0, %s45
      %s46 = sphi 0, %s43
      %s47 = sphi 0, %s46
      %s63 = sphi 0, %s47
      %s71 = sphi 0, %s73
      %s74 = sphi 0, %s71
      %s75 = sphi 0, %s74
      %s91 = sphi 0, %s75
      %s97 = sphi 0, %s99
      %s100 = sphi 0, %s97
      %s101 = sphi 0, %s100
      %s117 = sphi 0, %s101
      %s125 = sphi 0, %s127
      %s128 = sphi 0, %s125
      %s129 = sphi 0, %s128
      %s145 = sphi 0, %s129
    $region4: #{fc_linear_leaky.1} parent=1 // loop_header_branch
      %15 = sbr.rel (%p13) target = $region8
    $region5: #{fc_linear_leaky.1} parent=1 // loop_body
      %s17 = ssub.s32 %s12, 1
      %s18 = ssub.s32 %s12, 2
      %s28 = sadd.s32 1, %s21
      %p29 = scmp.ge.s32.totalorder %s28, 1
      %s30 = scalar_select %p29, 0, %s28
      %s31 = sadd.s32 1, %s20
      %s32 = scalar_select %p29, %s31, %s20
      %p33 = scmp.ge.s32.totalorder %s32, 2
      %s34 = scalar_select %p33, 0, %s32
      %s35 = sadd.s32 1, %s19
      %s36 = scalar_select %p33, %s35, %s19
      %p37 = scmp.ge.s32.totalorder %s36, 1
      %s38 = scalar_select %p37, 0, %s36
      %s39 = ssub.s32 %s19, %s38
      %s40 = ssub.s32 %s21, %s30
      %s41 = sor.u32 %s39, %s40
      %p42 = scmp.eq.s32.totalorder %s41, 0
      %s44 = sadd.s32 %s43, 1
      %s45 = scalar_select %p42, %s43, %s44
      %p48 = pneg %p42
      %p49 = scmp.eq.s32.totalorder %s12, 1
      %p50 = por %p48, %p49
      %p51 = scmp.ne.s32.totalorder %s43, %s46
      %p52 = scmp.eq.s32.totalorder %s12, 0
      %p53 = por %p51, %p52
      %p54 = scmp.ne.s32.totalorder %s43, %s46
      %p55 = scmp.eq.s32.totalorder %s17, 1
      %p56 = por %p54, %p55
      %p57 = scmp.ne.s32.totalorder %s46, %s47
      %p58 = scmp.eq.s32.totalorder %s17, 0
      %p59 = por %p57, %p58
      %p60 = scmp.ne.s32.totalorder %s46, %s47
      %p61 = scmp.eq.s32.totalorder %s18, 1
      %p62 = por %p60, %p61
      %p64 = scmp.ne.s32.totalorder %s47, %s63
      %p65 = scmp.eq.s32.totalorder %s18, 0
      %p66 = por %p64, %p65
      %s67 = ssub.s32 %s20, %s34
      %s68 = ssub.s32 %s21, %s30
      %s69 = sor.u32 %s67, %s68
      %p70 = scmp.eq.s32.totalorder %s69, 0
      %s72 = sadd.s32 %s71, 1
      %s73 = scalar_select %p70, %s71, %s72
      %p76 = pneg %p70
      %p77 = scmp.eq.s32.totalorder %s12, 1
      %p78 = por %p76, %p77
      %p79 = scmp.ne.s32.totalorder %s71, %s74
      %p80 = scmp.eq.s32.totalorder %s12, 0
      %p81 = por %p79, %p80
      %p82 = scmp.ne.s32.totalorder %s71, %s74
      %p83 = scmp.eq.s32.totalorder %s17, 1
      %p84 = por %p82, %p83
      %p85 = scmp.ne.s32.totalorder %s74, %s75
      %p86 = scmp.eq.s32.totalorder %s17, 0
      %p87 = por %p85, %p86
      %p88 = scmp.ne.s32.totalorder %s74, %s75
      %p89 = scmp.eq.s32.totalorder %s18, 1
      %p90 = por %p88, %p89
      %p92 = scmp.ne.s32.totalorder %s75, %s91
      %p93 = scmp.eq.s32.totalorder %s18, 0
      %p94 = por %p92, %p93
      %s95 = ssub.s32 %s20, %s34
      %p96 = scmp.eq.s32.totalorder %s95, 0
      %s98 = sadd.s32 %s97, 1
      %s99 = scalar_select %p96, %s97, %s98
      %p102 = pneg %p96
      %p103 = scmp.eq.s32.totalorder %s12, 1
      %p104 = por %p102, %p103
      %p105 = scmp.ne.s32.totalorder %s97, %s100
      %p106 = scmp.eq.s32.totalorder %s12, 0
      %p107 = por %p105, %p106
      %p108 = scmp.ne.s32.totalorder %s97, %s100
      %p109 = scmp.eq.s32.totalorder %s17, 1
      %p110 = por %p108, %p109
      %p111 = scmp.ne.s32.totalorder %s100, %s101
      %p112 = scmp.eq.s32.totalorder %s17, 0
      %p113 = por %p111, %p112
      %p114 = scmp.ne.s32.totalorder %s100, %s101
      %p115 = scmp.eq.s32.totalorder %s18, 1
      %p116 = por %p114, %p115
      %p118 = scmp.ne.s32.totalorder %s101, %s117
      %p119 = scmp.eq.s32.totalorder %s18, 0
      %p120 = por %p118, %p119
      %s121 = ssub.s32 %s19, %s38
      %s122 = ssub.s32 %s20, %s34
      %s123 = sor.u32 %s121, %s122
      %p124 = scmp.eq.s32.totalorder %s123, 0
      %s126 = sadd.s32 %s125, 1
      %s127 = scalar_select %p124, %s125, %s126
      %p130 = pneg %p124
      %p131 = scmp.eq.s32.totalorder %s12, 1
      %p132 = por %p130, %p131
      %p133 = scmp.ne.s32.totalorder %s125, %s128
      %p134 = scmp.eq.s32.totalorder %s12, 0
      %p135 = por %p133, %p134
      %p136 = scmp.ne.s32.totalorder %s125, %s128
      %p137 = scmp.eq.s32.totalorder %s17, 1
      %p138 = por %p136, %p137
      %p139 = scmp.ne.s32.totalorder %s128, %s129
      %p140 = scmp.eq.s32.totalorder %s17, 0
      %p141 = por %p139, %p140
      %p142 = scmp.ne.s32.totalorder %s128, %s129
      %p143 = scmp.eq.s32.totalorder %s18, 1
      %p144 = por %p142, %p143
      %p146 = scmp.ne.s32.totalorder %s129, %s145
      %p147 = scmp.eq.s32.totalorder %s18, 0
      %p148 = por %p146, %p147
      %p149 = scmp.le.s32.totalorder 1, %s12
      %p150 = scmp.lt.s32.totalorder %s12, 3
      %p151 = pnand %p149, %p150
      %p152 = pneg %p151
      // Predicated region
      $region9: #{fc_linear_leaky.1} parent=5 // pred_check
        _
      $region10: #{fc_linear_leaky.1} parent=5 // pred_check_branch
        %154 = sbr.rel (%p151) target = $region12
      $region11: #{fc_linear_leaky.1} parent=5 // pred_region
        %s155 = ssub.s32 %s12, 1
        // Predicated region
        $region13: #{fc_linear_leaky.1} parent=11 // pred_check
          %p156 = pneg %p59
        $region14: #{fc_linear_leaky.1} parent=11 // pred_check_branch
          %158 = sbr.rel (%p156) target = $region16
        $region15: #{fc_linear_leaky.1} parent=11 // pred_region
          %s159 = smul.u32 4, %s24
          %p160 = scmp.lt.s32.totalorder %s22, 0
          %s161 = scalar_select %p160, %s22, 0
          %p162 = scmp.lt.s32.totalorder %s159, 3
          %s163 = scalar_select %p162, %s159, 3
          %s164 = smul.addr %s161, 4
          %s165 = sadd.s32 %s163, %s164
          %s166 = smul.addr %s165, 4
          %s167 = scalar_lea.vmem %s0, %s166
          %s168 = smul.u32 4, %s24
        $region16: #{fc_linear_leaky.1} parent=11 // pred_fallthru
          _
      $region12: #{fc_linear_leaky.1} parent=5 // pred_fallthru
        _
      %p169 = scmp.lt.s32.totalorder %s12, 2
      // Predicated region
      $region17: #{fc_linear_leaky.1} parent=5 // pred_check
        %p170 = pneg %p169
      $region18: #{fc_linear_leaky.1} parent=5 // pred_check_branch
        %172 = sbr.rel (%p170) target = $region20
      $region19: #{fc_linear_leaky.1} parent=5 // pred_region
        // Predicated region
        $region21: #{fc_linear_leaky.1} parent=19 // pred_check
          %p173 = pneg %p81
        $region22: #{fc_linear_leaky.1} parent=19 // pred_check_branch
          %175 = sbr.rel (%p173) target = $region24
        $region23: #{fc_linear_leaky.1} parent=19 // pred_region
          %s176 = smul.u32 32, %s20
          %s177 = smul.u32 4, %s21
          %p178 = scmp.lt.s32.totalorder %s176, 63
          %s179 = scalar_select %p178, %s176, 63
          %p180 = scmp.lt.s32.totalorder %s177, 3
          %s181 = scalar_select %p180, %s177, 3
          %s182 = smul.addr %s179, 4
          %s183 = sadd.s32 %s181, %s182
          %s184 = smul.addr %s183, 4
          %s185 = scalar_lea.vmem %s1, %s184
          %s186 = smul.u32 32, %s20
          %s187 = smul.u32 4, %s21
        $region24: #{fc_linear_leaky.1} parent=19 // pred_fallthru
          _
        // Predicated region
        $region25: #{fc_linear_leaky.1} parent=19 // pred_check
          %p188 = pneg %p107
        $region26: #{fc_linear_leaky.1} parent=19 // pred_check_branch
          %190 = sbr.rel (%p188) target = $region28
        $region27: #{fc_linear_leaky.1} parent=19 // pred_region
          %s191 = smul.u32 2, %s20
          %p192 = scmp.lt.s32.totalorder %s191, 3
          %s193 = scalar_select %p192, %s191, 3
          %s194 = scalar_lea.vmem %s2, %s193
          %s195 = smul.u32 2, %s20
        $region28: #{fc_linear_leaky.1} parent=19 // pred_fallthru
          _
      $region20: #{fc_linear_leaky.1} parent=5 // pred_fallthru
        _
      %p196 = scmp.le.s32.totalorder 1, %s12
      %p197 = scmp.lt.s32.totalorder %s12, 3
      %p198 = pnand %p196, %p197
      %p199 = pneg %p198
      // Predicated region
      $region29: #{fc_linear_leaky.1} parent=5 // pred_check
        _
      $region30: #{fc_linear_leaky.1} parent=5 // pred_check_branch
        %201 = sbr.rel (%p198) target = $region32
      $region31: #{fc_linear_leaky.1} parent=5 // pred_region
        %s202 = ssub.s32 %s12, 1
        %s203 = smul.u32 4, %s24
        %p204 = scmp.lt.s32.totalorder %s22, 0
        %s205 = scalar_select %p204, %s22, 0
        %p206 = scmp.lt.s32.totalorder %s203, 3
        %s207 = scalar_select %p206, %s203, 3
        %s208 = smul.addr %s205, 4
        %s209 = sadd.s32 %s207, %s208
        %s210 = smul.addr %s209, 4
        %s211 = scalar_lea.vmem %s0, %s210
        %p212 = pneg %p59
        %p213 = pneg %p56
        %s214 = smul.u32 32, %s23
        %s215 = smul.u32 4, %s24
        %p216 = scmp.lt.s32.totalorder %s214, 63
        %s217 = scalar_select %p216, %s214, 63
        %p218 = scmp.lt.s32.totalorder %s215, 3
        %s219 = scalar_select %p218, %s215, 3
        %s220 = smul.addr %s217, 4
        %s221 = sadd.s32 %s219, %s220
        %s222 = smul.addr %s221, 4
        %s223 = scalar_lea.vmem %s1, %s222
        %p224 = pneg %p87
        %p225 = pneg %p84
        %s226 = smul.u32 2, %s23
        %p227 = scmp.lt.s32.totalorder %s226, 3
        %s228 = scalar_select %p227, %s226, 3
        %s229 = scalar_lea.vmem %s2, %s228
        %p230 = pneg %p113
        %p231 = pneg %p110
        %p232 = pneg %p141
        %p233 = pneg %p138
        %s234 = sand.u32 %s128, 1
        %s235 = scalar_lea.sflag [#allocation4], %s234
        %s236 = sand.u32 %s128, 1
        %s237 = smul.addr %s236, 16
        %s238 = scalar_lea.vmem [#allocation3], %s237
        %s239 = smul.u32 4, %s24
        %p240 = scmp.lt.s32.totalorder %s22, 0
        %s241 = scalar_select %p240, %s22, 0
        %p242 = scmp.lt.s32.totalorder %s239, 3
        %s243 = scalar_select %p242, %s239, 3
        %s244 = smul.addr %s241, 4
        %s245 = sadd.s32 %s243, %s244
        %s246 = smul.addr %s245, 4
        %s247 = scalar_lea.vmem %s0, %s246
        %s248 = smul.u32 4, %s24
        %s249 = smul.u32 32, %s23
        %s250 = smul.u32 4, %s24
        %p251 = scmp.lt.s32.totalorder %s249, 63
        %s252 = scalar_select %p251, %s249, 63
        %p253 = scmp.lt.s32.totalorder %s250, 3
        %s254 = scalar_select %p253, %s250, 3
        %s255 = smul.addr %s252, 4
        %s256 = sadd.s32 %s254, %s255
        %s257 = smul.addr %s256, 4
        %s258 = scalar_lea.vmem %s1, %s257
        %s259 = smul.u32 32, %s23
        %s260 = smul.u32 4, %s24
        %s261 = smul.u32 2, %s23
        %p262 = scmp.lt.s32.totalorder %s261, 3
        %s263 = scalar_select %p262, %s261, 3
        %s264 = scalar_lea.vmem %s2, %s263
        %s265 = smul.u32 2, %s23
        %s266 = smul.u32 2, %s23
        %p267 = scmp.eq.s32.totalorder %s24, 0
        // Predicated region
        $region33: #{fc_linear_leaky.1} parent=31 // pred_check
          %p268 = pneg %p267
        $region34: #{fc_linear_leaky.1} parent=31 // pred_check_branch
          %270 = sbr.rel (%p268) target = $region36
        $region35: #{fc_linear_leaky.1} parent=31 // pred_region
          %271 = vst [vmem:[#allocation2] sm:$0xff] 0.0
          %272 = vst [vmem:[#allocation2 + $0x8] sm:$0xff] 0.0
        $region36: #{fc_linear_leaky.1} parent=31 // pred_fallthru
          _
        %v273 = vld [vmem:[#allocation2] sm:$0xff]
        %v274 = vld [vmem:[#allocation2 + $0x8] sm:$0xff]
        %v275 = vld [vmem:[%s247] sm:$0xff]
        %v276 = vld [vmem:[%s247 + $0x8] sm:$0xff]
        %v277 = vld [vmem:[%s258] sm:$0xff]
        %v278 = vld [vmem:[%s258 + $0x8] sm:$0xff]
        %v279 = vld [vmem:[%s258 + $0x10] sm:$0xff]
        %v280 = vld [vmem:[%s258 + $0x18] sm:$0xff]
        %v281 = vld [vmem:[%s258 + $0x20] sm:$0xff]
        %v282 = vld [vmem:[%s258 + $0x28] sm:$0xff]
        %v283 = vld [vmem:[%s258 + $0x30] sm:$0xff]
        %v284 = vld [vmem:[%s258 + $0x38] sm:$0xff]
        %v285 = vld [vmem:[%s258 + $0x40] sm:$0xff]
        %v286 = vld [vmem:[%s258 + $0x48] sm:$0xff]
        %v287 = vld [vmem:[%s258 + $0x50] sm:$0xff]
        %v288 = vld [vmem:[%s258 + $0x58] sm:$0xff]
        %v289 = vld [vmem:[%s258 + $0x60] sm:$0xff]
        %v290 = vld [vmem:[%s258 + $0x68] sm:$0xff]
        %v291 = vld [vmem:[%s258 + $0x70] sm:$0xff]
        %v292 = vld [vmem:[%s258 + $0x78] sm:$0xff]
        %v293 = vld [vmem:[%s258 + $0x80] sm:$0xff]
        %v294 = vld [vmem:[%s258 + $0x88] sm:$0xff]
        %v295 = vld [vmem:[%s258 + $0x90] sm:$0xff]
        %v296 = vld [vmem:[%s258 + $0x98] sm:$0xff]
        %v297 = vld [vmem:[%s258 + $0xa0] sm:$0xff]
        %v298 = vld [vmem:[%s258 + $0xa8] sm:$0xff]
        %v299 = vld [vmem:[%s258 + $0xb0] sm:$0xff]
        %v300 = vld [vmem:[%s258 + $0xb8] sm:$0xff]
        %v301 = vld [vmem:[%s258 + $0xc0] sm:$0xff]
        %v302 = vld [vmem:[%s258 + $0xc8] sm:$0xff]
        %v303 = vld [vmem:[%s258 + $0xd0] sm:$0xff]
        %v304 = vld [vmem:[%s258 + $0xd8] sm:$0xff]
        %v305 = vld [vmem:[%s258 + $0xe0] sm:$0xff]
        %v306 = vld [vmem:[%s258 + $0xe8] sm:$0xff]
        %v307 = vld [vmem:[%s258 + $0xf0] sm:$0xff]
        %v308 = vld [vmem:[%s258 + $0xf8] sm:$0xff]
        %v309 = vld [vmem:[%s258 + $0x100] sm:$0xff]
        %v310 = vld [vmem:[%s258 + $0x108] sm:$0xff]
        %v311 = vld [vmem:[%s258 + $0x110] sm:$0xff]
        %v312 = vld [vmem:[%s258 + $0x118] sm:$0xff]
        %v313 = vld [vmem:[%s258 + $0x120] sm:$0xff]
        %v314 = vld [vmem:[%s258 + $0x128] sm:$0xff]
        %v315 = vld [vmem:[%s258 + $0x130] sm:$0xff]
        %v316 = vld [vmem:[%s258 + $0x138] sm:$0xff]
        %v317 = vld [vmem:[%s258 + $0x140] sm:$0xff]
        %v318 = vld [vmem:[%s258 + $0x148] sm:$0xff]
        %v319 = vld [vmem:[%s258 + $0x150] sm:$0xff]
        %v320 = vld [vmem:[%s258 + $0x158] sm:$0xff]
        %v321 = vld [vmem:[%s258 + $0x160] sm:$0xff]
        %v322 = vld [vmem:[%s258 + $0x168] sm:$0xff]
        %v323 = vld [vmem:[%s258 + $0x170] sm:$0xff]
        %v324 = vld [vmem:[%s258 + $0x178] sm:$0xff]
        %v325 = vld [vmem:[%s258 + $0x180] sm:$0xff]
        %v326 = vld [vmem:[%s258 + $0x188] sm:$0xff]
        %v327 = vld [vmem:[%s258 + $0x190] sm:$0xff]
        %v328 = vld [vmem:[%s258 + $0x198] sm:$0xff]
        %v329 = vld [vmem:[%s258 + $0x1a0] sm:$0xff]
        %v330 = vld [vmem:[%s258 + $0x1a8] sm:$0xff]
        %v331 = vld [vmem:[%s258 + $0x1b0] sm:$0xff]
        %v332 = vld [vmem:[%s258 + $0x1b8] sm:$0xff]
        %v333 = vld [vmem:[%s258 + $0x1c0] sm:$0xff]
        %v334 = vld [vmem:[%s258 + $0x1c8] sm:$0xff]
        %v335 = vld [vmem:[%s258 + $0x1d0] sm:$0xff]
        %v336 = vld [vmem:[%s258 + $0x1d8] sm:$0xff]
        %v337 = vld [vmem:[%s258 + $0x1e0] sm:$0xff]
        %v338 = vld [vmem:[%s258 + $0x1e8] sm:$0xff]
        %v339 = vld [vmem:[%s258 + $0x1f0] sm:$0xff]
        %v340 = vld [vmem:[%s258 + $0x1f8] sm:$0xff]
        %v343 = vunpack.c.l.b16 %v275
        %v344 = vunpack.c.h.b16 %v275
        %v345 = vunpack.c.l.b16 %v276
        %v346 = vunpack.c.h.b16 %v276
        %v347 = vpack.c.b16 %v343, %v343
        %v348 = vpack.c.b16 %v344, %v344
        %v349 = vpack.c.b16 %v345, %v345
        %v350 = vpack.c.b16 %v346, %v346
        %v419 = vunpack.c.l.b16 %v277
        %v420 = vunpack.c.h.b16 %v277
        %v421 = vunpack.c.l.b16 %v278
        %v422 = vunpack.c.h.b16 %v278
        %v423 = vunpack.c.l.b16 %v279
        %v424 = vunpack.c.h.b16 %v279
        %v425 = vunpack.c.l.b16 %v280
        %v426 = vunpack.c.h.b16 %v280
        %v427 = vunpack.c.l.b16 %v281
        %v428 = vunpack.c.h.b16 %v281
        %v429 = vunpack.c.l.b16 %v282
        %v430 = vunpack.c.h.b16 %v282
        %v431 = vunpack.c.l.b16 %v283
        %v432 = vunpack.c.h.b16 %v283
        %v433 = vunpack.c.l.b16 %v284
        %v434 = vunpack.c.h.b16 %v284
        %v435 = vunpack.c.l.b16 %v285
        %v436 = vunpack.c.h.b16 %v285
        %v437 = vunpack.c.l.b16 %v286
        %v438 = vunpack.c.h.b16 %v286
        %v439 = vunpack.c.l.b16 %v287
        %v440 = vunpack.c.h.b16 %v287
        %v441 = vunpack.c.l.b16 %v288
        %v442 = vunpack.c.h.b16 %v288
        %v443 = vunpack.c.l.b16 %v289
        %v444 = vunpack.c.h.b16 %v289
        %v445 = vunpack.c.l.b16 %v290
        %v446 = vunpack.c.h.b16 %v290
        %v447 = vunpack.c.l.b16 %v291
        %v448 = vunpack.c.h.b16 %v291
        %v449 = vunpack.c.l.b16 %v292
        %v450 = vunpack.c.h.b16 %v292
        %v451 = vunpack.c.l.b16 %v293
        %v452 = vunpack.c.h.b16 %v293
        %v453 = vunpack.c.l.b16 %v294
        %v454 = vunpack.c.h.b16 %v294
        %v455 = vunpack.c.l.b16 %v295
        %v456 = vunpack.c.h.b16 %v295
        %v457 = vunpack.c.l.b16 %v296
        %v458 = vunpack.c.h.b16 %v296
        %v459 = vunpack.c.l.b16 %v297
        %v460 = vunpack.c.h.b16 %v297
        %v461 = vunpack.c.l.b16 %v298
        %v462 = vunpack.c.h.b16 %v298
        %v463 = vunpack.c.l.b16 %v299
        %v464 = vunpack.c.h.b16 %v299
        %v465 = vunpack.c.l.b16 %v300
        %v466 = vunpack.c.h.b16 %v300
        %v467 = vunpack.c.l.b16 %v301
        %v468 = vunpack.c.h.b16 %v301
        %v469 = vunpack.c.l.b16 %v302
        %v470 = vunpack.c.h.b16 %v302
        %v471 = vunpack.c.l.b16 %v303
        %v472 = vunpack.c.h.b16 %v303
        %v473 = vunpack.c.l.b16 %v304
        %v474 = vunpack.c.h.b16 %v304
        %v475 = vunpack.c.l.b16 %v305
        %v476 = vunpack.c.h.b16 %v305
        %v477 = vunpack.c.l.b16 %v306
        %v478 = vunpack.c.h.b16 %v306
        %v479 = vunpack.c.l.b16 %v307
        %v480 = vunpack.c.h.b16 %v307
        %v481 = vunpack.c.l.b16 %v308
        %v482 = vunpack.c.h.b16 %v308
        %v483 = vunpack.c.l.b16 %v309
        %v484 = vunpack.c.h.b16 %v309
        %v485 = vunpack.c.l.b16 %v310
        %v486 = vunpack.c.h.b16 %v310
        %v487 = vunpack.c.l.b16 %v311
        %v488 = vunpack.c.h.b16 %v311
        %v489 = vunpack.c.l.b16 %v312
        %v490 = vunpack.c.h.b16 %v312
        %v491 = vunpack.c.l.b16 %v313
        %v492 = vunpack.c.h.b16 %v313
        %v493 = vunpack.c.l.b16 %v314
        %v494 = vunpack.c.h.b16 %v314
        %v495 = vunpack.c.l.b16 %v315
        %v496 = vunpack.c.h.b16 %v315
        %v497 = vunpack.c.l.b16 %v316
        %v498 = vunpack.c.h.b16 %v316
        %v499 = vunpack.c.l.b16 %v317
        %v500 = vunpack.c.h.b16 %v317
        %v501 = vunpack.c.l.b16 %v318
        %v502 = vunpack.c.h.b16 %v318
        %v503 = vunpack.c.l.b16 %v319
        %v504 = vunpack.c.h.b16 %v319
        %v505 = vunpack.c.l.b16 %v320
        %v506 = vunpack.c.h.b16 %v320
        %v507 = vunpack.c.l.b16 %v321
        %v508 = vunpack.c.h.b16 %v321
        %v509 = vunpack.c.l.b16 %v322
        %v510 = vunpack.c.h.b16 %v322
        %v511 = vunpack.c.l.b16 %v323
        %v512 = vunpack.c.h.b16 %v323
        %v513 = vunpack.c.l.b16 %v324
        %v514 = vunpack.c.h.b16 %v324
        %v515 = vunpack.c.l.b16 %v325
        %v516 = vunpack.c.h.b16 %v325
        %v517 = vunpack.c.l.b16 %v326
        %v518 = vunpack.c.h.b16 %v326
        %v519 = vunpack.c.l.b16 %v327
        %v520 = vunpack.c.h.b16 %v327
        %v521 = vunpack.c.l.b16 %v328
        %v522 = vunpack.c.h.b16 %v328
        %v523 = vunpack.c.l.b16 %v329
        %v524 = vunpack.c.h.b16 %v329
        %v525 = vunpack.c.l.b16 %v330
        %v526 = vunpack.c.h.b16 %v330
        %v527 = vunpack.c.l.b16 %v331
        %v528 = vunpack.c.h.b16 %v331
        %v529 = vunpack.c.l.b16 %v332
        %v530 = vunpack.c.h.b16 %v332
        %v531 = vunpack.c.l.b16 %v333
        %v532 = vunpack.c.h.b16 %v333
        %v533 = vunpack.c.l.b16 %v334
        %v534 = vunpack.c.h.b16 %v334
        %v535 = vunpack.c.l.b16 %v335
        %v536 = vunpack.c.h.b16 %v335
        %v537 = vunpack.c.l.b16 %v336
        %v538 = vunpack.c.h.b16 %v336
        %v539 = vunpack.c.l.b16 %v337
        %v540 = vunpack.c.h.b16 %v337
        %v541 = vunpack.c.l.b16 %v338
        %v542 = vunpack.c.h.b16 %v338
        %v543 = vunpack.c.l.b16 %v339
        %v544 = vunpack.c.h.b16 %v339
        %v545 = vunpack.c.l.b16 %v340
        %v546 = vunpack.c.h.b16 %v340
        %v547 = vpack.c.b16 %v423, %v419
        %v548 = vpack.c.b16 %v424, %v420
        %v549 = vpack.c.b16 %v425, %v421
        %v550 = vpack.c.b16 %v426, %v422
        %v551 = vpack.c.b16 %v431, %v427
        %v552 = vpack.c.b16 %v432, %v428
        %v553 = vpack.c.b16 %v433, %v429
        %v554 = vpack.c.b16 %v434, %v430
        %v555 = vpack.c.b16 %v439, %v435
        %v556 = vpack.c.b16 %v440, %v436
        %v557 = vpack.c.b16 %v441, %v437
        %v558 = vpack.c.b16 %v442, %v438
        %v559 = vpack.c.b16 %v447, %v443
        %v560 = vpack.c.b16 %v448, %v444
        %v561 = vpack.c.b16 %v449, %v445
        %v562 = vpack.c.b16 %v450, %v446
        %v563 = vpack.c.b16 %v455, %v451
        %v564 = vpack.c.b16 %v456, %v452
        %v565 = vpack.c.b16 %v457, %v453
        %v566 = vpack.c.b16 %v458, %v454
        %v567 = vpack.c.b16 %v463, %v459
        %v568 = vpack.c.b16 %v464, %v460
        %v569 = vpack.c.b16 %v465, %v461
        %v570 = vpack.c.b16 %v466, %v462
        %v571 = vpack.c.b16 %v471, %v467
        %v572 = vpack.c.b16 %v472, %v468
        %v573 = vpack.c.b16 %v473, %v469
        %v574 = vpack.c.b16 %v474, %v470
        %v575 = vpack.c.b16 %v479, %v475
        %v576 = vpack.c.b16 %v480, %v476
        %v577 = vpack.c.b16 %v481, %v477
        %v578 = vpack.c.b16 %v482, %v478
        %v579 = vpack.c.b16 %v487, %v483
        %v580 = vpack.c.b16 %v488, %v484
        %v581 = vpack.c.b16 %v489, %v485
        %v582 = vpack.c.b16 %v490, %v486
        %v583 = vpack.c.b16 %v495, %v491
        %v584 = vpack.c.b16 %v496, %v492
        %v585 = vpack.c.b16 %v497, %v493
        %v586 = vpack.c.b16 %v498, %v494
        %v587 = vpack.c.b16 %v503, %v499
        %v588 = vpack.c.b16 %v504, %v500
        %v589 = vpack.c.b16 %v505, %v501
        %v590 = vpack.c.b16 %v506, %v502
        %v591 = vpack.c.b16 %v511, %v507
        %v592 = vpack.c.b16 %v512, %v508
        %v593 = vpack.c.b16 %v513, %v509
        %v594 = vpack.c.b16 %v514, %v510
        %v595 = vpack.c.b16 %v519, %v515
        %v596 = vpack.c.b16 %v520, %v516
        %v597 = vpack.c.b16 %v521, %v517
        %v598 = vpack.c.b16 %v522, %v518
        %v599 = vpack.c.b16 %v527, %v523
        %v600 = vpack.c.b16 %v528, %v524
        %v601 = vpack.c.b16 %v529, %v525
        %v602 = vpack.c.b16 %v530, %v526
        %v603 = vpack.c.b16 %v535, %v531
        %v604 = vpack.c.b16 %v536, %v532
        %v605 = vpack.c.b16 %v537, %v533
        %v606 = vpack.c.b16 %v538, %v534
        %v607 = vpack.c.b16 %v543, %v539
        %v608 = vpack.c.b16 %v544, %v540
        %v609 = vpack.c.b16 %v545, %v541
        %v610 = vpack.c.b16 %v546, %v542
        %675 = vmatprep.subr.bf16.mxu0 %v548
        %676 = vmatpush1.bf16.xpose.msra.mxu0 %v547
        %677 = vmatprep.subr.bf16.mxu0 %v552
        %678 = vmatpush1.bf16.xpose.msra.mxu0 %v551
        %679 = vmatprep.subr.bf16.mxu0 %v556
        %680 = vmatpush1.bf16.xpose.msra.mxu0 %v555
        %681 = vmatprep.subr.bf16.mxu0 %v560
        %682 = vmatpush1.bf16.xpose.msra.mxu0 %v559
        %683 = vmatprep.subr.bf16.mxu0 %v564
        %684 = vmatpush1.bf16.xpose.msra.mxu0 %v563
        %685 = vmatprep.subr.bf16.mxu0 %v568
        %686 = vmatpush1.bf16.xpose.msra.mxu0 %v567
        %687 = vmatprep.subr.bf16.mxu0 %v572
        %688 = vmatpush1.bf16.xpose.msra.mxu0 %v571
        %689 = vmatprep.subr.bf16.mxu0 %v576
        %690 = vmatpush1.bf16.xpose.msra.mxu0 %v575
        %691 = vmatprep.subr.bf16.mxu0 %v580
        %692 = vmatpush1.bf16.xpose.msra.mxu0 %v579
        %693 = vmatprep.subr.bf16.mxu0 %v584
        %694 = vmatpush1.bf16.xpose.msra.mxu0 %v583
        %695 = vmatprep.subr.bf16.mxu0 %v588
        %696 = vmatpush1.bf16.xpose.msra.mxu0 %v587
        %697 = vmatprep.subr.bf16.mxu0 %v592
        %698 = vmatpush1.bf16.xpose.msra.mxu0 %v591
        %699 = vmatprep.subr.bf16.mxu0 %v596
        %700 = vmatpush1.bf16.xpose.msra.mxu0 %v595
        %701 = vmatprep.subr.bf16.mxu0 %v600
        %702 = vmatpush1.bf16.xpose.msra.mxu0 %v599
        %703 = vmatprep.subr.bf16.mxu0 %v604
        %704 = vmatpush1.bf16.xpose.msra.mxu0 %v603
        %705 = vmatprep.subr.bf16.mxu0 %v608
        %706 = vmatpush1.bf16.xpose.msra.mxu0 %v607
        %707 = vmatprep.mubr.bf16.mxu0 %v348
        %708 = vmatmul.mubr.bf16.gmra.mrb[0].mxu0 %v347
        %v709 = vpop.f32.mrb[0].mxu0
        %v710 = vadd.f32 0.0, %v709
        %v711 = vpop.f32.mrb[0].mxu0
        %v712 = vadd.f32 0.0, %v711
        %v713 = vpop.f32.mrb[0].mxu0
        %v714 = vpop.f32.mrb[0].mxu0
        %715 = vdwg.mxu0
        %716 = vmatprep.subr.bf16.mxu0 %v550
        %717 = vmatpush1.bf16.xpose.msra.mxu0 %v549
        %718 = vmatprep.subr.bf16.mxu0 %v554
        %719 = vmatpush1.bf16.xpose.msra.mxu0 %v553
        %720 = vmatprep.subr.bf16.mxu0 %v558
        %721 = vmatpush1.bf16.xpose.msra.mxu0 %v557
        %722 = vmatprep.subr.bf16.mxu0 %v562
        %723 = vmatpush1.bf16.xpose.msra.mxu0 %v561
        %724 = vmatprep.subr.bf16.mxu0 %v566
        %725 = vmatpush1.bf16.xpose.msra.mxu0 %v565
        %726 = vmatprep.subr.bf16.mxu0 %v570
        %727 = vmatpush1.bf16.xpose.msra.mxu0 %v569
        %728 = vmatprep.subr.bf16.mxu0 %v574
        %729 = vmatpush1.bf16.xpose.msra.mxu0 %v573
        %730 = vmatprep.subr.bf16.mxu0 %v578
        %731 = vmatpush1.bf16.xpose.msra.mxu0 %v577
        %732 = vmatprep.subr.bf16.mxu0 %v582
        %733 = vmatpush1.bf16.xpose.msra.mxu0 %v581
        %734 = vmatprep.subr.bf16.mxu0 %v586
        %735 = vmatpush1.bf16.xpose.msra.mxu0 %v585
        %736 = vmatprep.subr.bf16.mxu0 %v590
        %737 = vmatpush1.bf16.xpose.msra.mxu0 %v589
        %738 = vmatprep.subr.bf16.mxu0 %v594
        %739 = vmatpush1.bf16.xpose.msra.mxu0 %v593
        %740 = vmatprep.subr.bf16.mxu0 %v598
        %741 = vmatpush1.bf16.xpose.msra.mxu0 %v597
        %742 = vmatprep.subr.bf16.mxu0 %v602
        %743 = vmatpush1.bf16.xpose.msra.mxu0 %v601
        %744 = vmatprep.subr.bf16.mxu0 %v606
        %745 = vmatpush1.bf16.xpose.msra.mxu0 %v605
        %746 = vmatprep.subr.bf16.mxu0 %v610
        %747 = vmatpush1.bf16.xpose.msra.mxu0 %v609
        %748 = vmatprep.mubr.bf16.mxu0 %v350
        %749 = vmatmul.mubr.bf16.gmra.mrb[0].mxu0 %v349
        %v750 = vpop.f32.mrb[0].mxu0
        %v751 = vadd.f32 %v710, %v750
        %v752 = vpop.f32.mrb[0].mxu0
        %v753 = vadd.f32 %v712, %v752
        %v754 = vpop.f32.mrb[0].mxu0
        %v755 = vpop.f32.mrb[0].mxu0
        %756 = vdwg.mxu0
        %v757 = vadd.f32 %v273, %v751
        %v758 = vadd.f32 %v274, %v753
        %759 = vst [vmem:[#allocation2] sm:$0xff] %v757
        %760 = vst [vmem:[#allocation2 + $0x8] sm:$0xff] %v758
        // Predicated region
        $region37: #{fc_linear_leaky.1} parent=31 // pred_check
          %p761 = pneg %p267
        $region38: #{fc_linear_leaky.1} parent=31 // pred_check_branch
          %763 = sbr.rel (%p761) target = $region40
        $region39: #{fc_linear_leaky.1} parent=31 // pred_region
          %v764 = vld [vmem:[#allocation2] sm:$0xff]
          %v765 = vld [vmem:[#allocation2 + $0x8] sm:$0xff]
          %v766 = vld [vmem:[%s264] sm:$0x3]
          %v768 = vlaneseq
          %v769 = vshrl.u32 %v768, 7
          %v770 = vsub.s32 0, %v769
          %v771 = vrot.slane %v766, %v770
          %v772 = vlaneseq
          %v773 = vshrl.u32 %v772, 7
          %v774 = vsub.s32 1, %v773
          %v775 = vrot.slane %v766, %v774
          %v778 = vadd.f32 %v764, %v771
          %v779 = vadd.f32 %v765, %v775
          %vm780 = vcmp.ge.f32.partialorder %v778, 0.0
          %vm781 = vcmp.ge.f32.partialorder %v779, 0.0
          %v782 = vmul.f32 %v778, 0.2
          %v783 = vmul.f32 %v779, 0.2
          %v784 = vsel %vm780, %v778, %v782
          %v785 = vsel %vm781, %v779, %v783
          %786 = vst [vmem:[%s238] sm:$0xff] %v784
          %787 = vst [vmem:[%s238 + $0x8] sm:$0xff] %v785
        $region40: #{fc_linear_leaky.1} parent=31 // pred_fallthru
          _
        %s788 = sand.u32 %s128, 1
        %s789 = scalar_lea.sflag [#allocation4], %s788
        %s790 = sand.u32 %s128, 1
        %s791 = smul.addr %s790, 16
        %s792 = scalar_lea.vmem [#allocation3], %s791
        // Predicated region
        $region41: #{fc_linear_leaky.1} parent=31 // pred_check
          %p793 = pneg %p138
        $region42: #{fc_linear_leaky.1} parent=31 // pred_check_branch
          %795 = sbr.rel (%p793) target = $region44
        $region43: #{fc_linear_leaky.1} parent=31 // pred_region
          %s796 = smul.u32 2, %s23
          %s798 = ssub.s32 256, 256
          %799 = vsyncadd %s789, %s798
          %s800 = smul.addr %s22, 4
          %s801 = sadd.s32 %s796, %s800
          %s802 = smul.addr %s801, 128
          %s803 = scalar_lea.hbm %s3, %s802
          %s805 = sshll.u32 %s792, 4
          %s806 = int_to_ptr.vmem [resolvable:$true] %s805
          %808 = dma.vmem_to_hbm [thread:$0]  %s806, 256, %s803, %s789
        $region44: #{fc_linear_leaky.1} parent=31 // pred_fallthru
          _
      $region32: #{fc_linear_leaky.1} parent=5 // pred_fallthru
        _
      %p809 = scmp.le.s32.totalorder 2, %s12
      // Predicated region
      $region45: #{fc_linear_leaky.1} parent=5 // pred_check
        %p810 = pneg %p809
      $region46: #{fc_linear_leaky.1} parent=5 // pred_check_branch
        %812 = sbr.rel (%p810) target = $region48
      $region47: #{fc_linear_leaky.1} parent=5 // pred_region
        %s813 = ssub.s32 %s12, 2
        // Predicated region
        $region49: #{fc_linear_leaky.1} parent=47 // pred_check
          %p814 = pneg %p144
        $region50: #{fc_linear_leaky.1} parent=47 // pred_check_branch
          %816 = sbr.rel (%p814) target = $region52
        $region51: #{fc_linear_leaky.1} parent=47 // pred_region
          %s817 = sand.u32 %s129, 1
          %s818 = scalar_lea.sflag [#allocation4], %s817
          %s819 = sand.u32 %s129, 1
          %s820 = smul.addr %s819, 16
          %s821 = scalar_lea.vmem [#allocation3], %s820
          %822 = dma.done %s818, 256
        $region52: #{fc_linear_leaky.1} parent=47 // pred_fallthru
          _
      $region48: #{fc_linear_leaky.1} parent=5 // pred_fallthru
        _
    $region6: #{fc_linear_leaky.1} parent=1 // loop_footer
      %s16 = sadd.s32 1, %s12
    $region7: #{fc_linear_leaky.1} parent=1 // loop_footer_branch
      %11 = sbr.rel target = $region3
    $region8: #{fc_linear_leaky.1} parent=1 // loop_exit
      _
    %823 = vsyncpa [#allocation4], 1
    %s824 = scalar_lea.sflag [#allocation4], 1
    %825 = vsyncpa %s824, 1

</llo_original>
